<compile_context>
chip_gen: v7x
topology: tpu7x:2x2x1
jax: 0.10.0
libtpu: 0.0.40
codegen_flags: <defaults>
</compile_context>

<pallas_src>
import functools
from typing import NamedTuple

import jax
import jax.numpy as jnp
import numpy as np
from jax.experimental import pallas as pl
from jax.experimental.pallas import tpu as pltpu

LN_EPS = 1e-5  # PyTorch nn.LayerNorm default


def _round_up(a, m):
    return ((a + m - 1) // m) * m


def _prenorm_kernel(x_ref, w_ref, b_ref, o_ref, xn_ref, *, inv_d):
    # LayerNorm (affine already folded into w/b) is computed once per row
    # tile -- at the first output-column tile -- and cached in VMEM scratch,
    # so its cost is independent of the D_out tiling.
    @pl.when(pl.program_id(1) == 0)
    def _():
        x = x_ref[...].astype(jnp.float32)
        s = jnp.sum(x, axis=-1, keepdims=True)
        ss = jnp.sum(x * x, axis=-1, keepdims=True)
        mean = s * inv_d
        var = jnp.maximum(ss * inv_d - mean * mean, 0.0)  # guard cancellation
        inv_std = jax.lax.rsqrt(var + LN_EPS)
        # NOTE: feature columns >= D (zero-padded in x) become -mean*inv_std
        # here; correctness relies on the corresponding ROWS of w_ref being
        # exactly zero (enforced in prepare_prenorm_linear), so they
        # contribute nothing to the matmul below.
        xn_ref[...] = ((x - mean) * inv_std).astype(xn_ref.dtype)

    # fn = Linear: MXU matmul with f32 accumulation; gamma/beta pre-folded.
    out = jnp.dot(xn_ref[...], w_ref[...], preferred_element_type=jnp.float32)
    o_ref[...] = (out + b_ref[...]).astype(o_ref.dtype)


class PreNormLinearParams(NamedTuple):
    wp: jax.Array   # (Dp, Doutp) folded gamma*W, zero-padded, MXU dtype
    bp: jax.Array   # (1, Doutp)  folded beta@W + b, f32
    dim: int
    dim_out: int


def prepare_prenorm_linear(gamma, beta, w, wb, *, mxu_dtype=jnp.bfloat16):
    """One-time parameter prep (call once per layer; reuse across calls)."""
    D, D_out = w.shape
    w_f = w.astype(jnp.float32)
    w_fold = gamma.astype(jnp.float32)[:, None] * w_f                  # (D, D_out)
    b_fold = beta.astype(jnp.float32) @ w_f + wb.astype(jnp.float32)   # (D_out,)
    Dp, Doutp = _round_up(D, 128), _round_up(D_out, 128)
    # Padded rows/cols MUST stay exactly zero (see note in the kernel).
    wp = jnp.zeros((Dp, Doutp), mxu_dtype).at[:D, :D_out].set(
        w_fold.astype(mxu_dtype))
    bp = jnp.zeros((1, Doutp), jnp.float32).at[0, :D_out].set(b_fold)
    return PreNormLinearParams(wp, bp, D, D_out)


def prenorm_linear(params, x, *, row_tile=512, col_tile=None):
    """out = Linear(LayerNorm(x)) with pre-folded/padded params; x: (B, N, D)."""
    B, N, D = x.shape
    assert D == params.dim
    D_out = params.dim_out
    wp, bp = params.wp, params.bp
    Dp, Doutp = wp.shape
    rows = B * N
    out_dtype = x.dtype
    mxu_dtype = wp.dtype
    sub = 16 if (x.dtype == jnp.bfloat16 or mxu_dtype == jnp.bfloat16) else 8

    # Generation-aware VMEM budget (v7x: 64 MiB physical -> ~48 MiB budget;
    # v5e/v6e: 128 MiB physical -> 100 MiB cap).
    try:
        vmem_cap = int(pltpu.get_tpu_info().vmem_capacity_bytes)
    except Exception:  # conservative fallback
        vmem_cap = 64 << 20
    vmem_budget = min(100 << 20, (vmem_cap * 3) // 4)

    # --- activations: reshape only; pad feature columns only when needed ---
    x2 = x.reshape(rows, D)
    if Dp != D:
        x2 = jnp.pad(x2, ((0, 0), (0, Dp - D)))   # column pad only (LN needs it)

    # --- balanced row tiling; no row padding of the array (edge blocks are
    # masked by the pipeline via a cdiv grid) ---
    nominal = max(sub, min(row_tile, _round_up(rows, sub)))
    rt = _round_up(pl.cdiv(rows, pl.cdiv(rows, nominal)), sub)

    # --- column tiling: keep the folded weight VMEM-resident when it fits ---
    if col_tile is None:
        resident_budget = (8 << 20) if vmem_cap <= (64 << 20) else (16 << 20)
        if 2 * Dp * Doutp * wp.dtype.itemsize <= resident_budget:
            ct = Doutp                              # single j: W DMA'd once
        else:
            ct = _round_up(pl.cdiv(Doutp, pl.cdiv(Doutp, 512)), 128)
    else:
        ct = _round_up(min(col_tile, Doutp), 128)

    # --- shrink row tile until the full working set (incl. f32 temporaries
    # and the xn scratch) fits the VMEM budget (matters on v7x) ---
    def est(rt_, ct_):
        return (2 * rt_ * Dp * x2.dtype.itemsize                # x (double-buffered)
                + 2 * Dp * ct_ * wp.dtype.itemsize              # W (double-buffered)
                + 2 * ct_ * 4                                   # bias
                + 2 * rt_ * ct_ * jnp.dtype(out_dtype).itemsize # out (double-buffered)
                + rt_ * Dp * jnp.dtype(mxu_dtype).itemsize      # xn scratch
                + 2 * rt_ * Dp * 4                              # f32 x / xn temporaries
                + rt_ * ct_ * 4)                                # f32 accumulator
    while rt > sub and est(rt, ct) > vmem_budget:
        rt = max(sub, _round_up(rt // 2, sub))

    grid = (pl.cdiv(rows, rt), pl.cdiv(Doutp, ct))
    kernel = functools.partial(_prenorm_kernel, inv_d=np.float32(1.0 / D))

    # (Optional future tweak: pipeline_mode=pl.Buffered(3) on the x spec if
    #  DMA latency is exposed for small D; not needed for correctness.)
    out2 = pl.pallas_call(
        kernel,
        out_shape=jax.ShapeDtypeStruct((rows, D_out), out_dtype),
        grid_spec=pltpu.PrefetchScalarGridSpec(
            num_scalar_prefetch=0,
            grid=grid,
            in_specs=[
                # x tile: block index constant over j -> fetched once per i.
                pl.BlockSpec((rt, Dp), lambda i, j: (i, 0)),
                # folded weight: constant block when ct == Doutp -> resident,
                # DMA'd from HBM exactly once for the whole grid.
                pl.BlockSpec((Dp, ct), lambda i, j: (0, j)),
                pl.BlockSpec((1, ct), lambda i, j: (0, j)),
            ],
            out_specs=pl.BlockSpec((rt, ct), lambda i, j: (i, j)),
            scratch_shapes=[pltpu.VMEM((rt, Dp), mxu_dtype)],   # cached xn
        ),
        compiler_params=pltpu.CompilerParams(
            # Megacore shards rows only; j stays sequential per core so the
            # xn scratch can be reused across output-column tiles.
            dimension_semantics=("parallel", "arbitrary"),
            vmem_limit_bytes=int(vmem_budget)),
    )(x2, wp, bp)

    return out2.reshape(B, N, D_out)


def _reference(x, gamma, beta, w, wb):
    xf = x.astype(jnp.float32)
    mean = jnp.mean(xf, axis=-1, keepdims=True)
    var = jnp.mean((xf - mean) ** 2, axis=-1, keepdims=True)
    xn = (xf - mean) / jnp.sqrt(var + LN_EPS)
    y = xn * gamma.astype(jnp.float32) + beta.astype(jnp.float32)
    return y @ w.astype(jnp.float32) + wb.astype(jnp.float32)


if __name__ == "__main__":
    key = jax.random.PRNGKey(0)
    B, N, D = 2, 8, 32  # batch=2, seq=8, hidden=32

    k1, k2, k3, k4, k5 = jax.random.split(key, 5)
    x = jax.random.normal(k1, (B, N, D), dtype=jnp.float32)
    gamma = 1.0 + 0.1 * jax.random.normal(k4, (D,), dtype=jnp.float32)
    beta = 0.1 * jax.random.normal(k5, (D,), dtype=jnp.float32)
    w = jax.random.normal(k2, (D, D), dtype=jnp.float32) * 0.02
    wb = jax.random.normal(k3, (D,), dtype=jnp.float32) * 0.02

    ref = _reference(x, gamma, beta, w, wb)

    # 1) exact f32 MXU path (bit-accuracy check).
    p32 = prepare_prenorm_linear(gamma, beta, w, wb, mxu_dtype=jnp.float32)
    out = jax.block_until_ready(prenorm_linear(p32, x))
    np.testing.assert_allclose(np.asarray(out), np.asarray(ref),
                               rtol=1e-4, atol=1e-4)

    # 2) default bf16 MXU path (f32 accumulation) for f32 inputs.
    pbf = prepare_prenorm_linear(gamma, beta, w, wb)  # mxu_dtype=bf16
    out_bf = jax.block_until_ready(prenorm_linear(pbf, x))
    np.testing.assert_allclose(np.asarray(out_bf), np.asarray(ref),
                               rtol=5e-2, atol=5e-2)

    # 3) bf16 activations (same prepped bf16 params).
    xb = x.astype(jnp.bfloat16)
    out_b = jax.block_until_ready(prenorm_linear(pbf, xb))
    ref_b = _reference(xb, gamma, beta, w, wb)
    np.testing.assert_allclose(np.asarray(out_b, dtype=np.float32),
                               np.asarray(ref_b), rtol=5e-2, atol=5e-2)

    # 4) multi-column-tile path: exercises the xn VMEM cache across j, the
    #    no-pad activation path (D % 128 == 0) and the masked row edge block
    #    (rows=26 against a 32-row tile).
    D2, D2_out, N2 = 128, 384, 13
    q1, q2, q3, q4, q5 = jax.random.split(jax.random.PRNGKey(1), 5)
    x4 = jax.random.normal(q1, (B, N2, D2), dtype=jnp.float32)
    g4 = 1.0 + 0.1 * jax.random.normal(q2, (D2,), dtype=jnp.float32)
    be4 = 0.1 * jax.random.normal(q3, (D2,), dtype=jnp.float32)
    w4 = jax.random.normal(q4, (D2, D2_out), dtype=jnp.float32) * 0.02
    wb4 = jax.random.normal(q5, (D2_out,), dtype=jnp.float32) * 0.02
    p4 = prepare_prenorm_linear(g4, be4, w4, wb4, mxu_dtype=jnp.float32)
    out4 = jax.block_until_ready(prenorm_linear(p4, x4, col_tile=128))
    ref4 = _reference(x4, g4, be4, w4, wb4)
    np.testing.assert_allclose(np.asarray(out4), np.asarray(ref4),
                               rtol=1e-4, atol=1e-4)

    print("KERNEL_OK")
</pallas_src>

<mosaic_0001>
module attributes {stable_mosaic.version = 11 : i64} {
  func.func @_prenorm_kernel(%arg0: i32, %arg1: i32, %arg2: memref<16x128xf32, #tpu.memory_space<vmem>>, %arg3: memref<128x128xf32, #tpu.memory_space<vmem>>, %arg4: memref<1x128xf32, #tpu.memory_space<vmem>>, %arg5: memref<16x128xf32, #tpu.memory_space<vmem>>, %arg6: memref<16x128xf32, #tpu.memory_space<vmem>>) attributes {dimension_semantics = [#tpu.dimension_semantics<parallel>, #tpu.dimension_semantics<arbitrary>], iteration_bounds = array<i64: 1, 1>, scalar_prefetch = 0 : i64, scratch_operands = 1 : i64, tpu.core_type = #tpu.core_type<tc>, window_params = [{transform_indices = @transform_0, window_bounds = array<i64: 16, 128>}, {transform_indices = @transform_1, window_bounds = array<i64: 128, 128>}, {transform_indices = @transform_2, window_bounds = array<i64: 1, 128>}, {transform_indices = @transform_3, window_bounds = array<i64: 16, 128>}]} {
    %c0_i32 = arith.constant 0 : i32
    %0 = arith.cmpi eq, %arg1, %c0_i32 : i32
    %1 = arith.extui %0 : i1 to i32
    %c0_i32_0 = arith.constant 0 : i32
    %2 = arith.cmpi ne, %1, %c0_i32_0 : i32
    scf.if %2 {
      %c0_8 = arith.constant 0 : index
      %c0_9 = arith.constant 0 : index
      %10 = vector.load %arg2[%c0_8, %c0_9] : memref<16x128xf32, #tpu.memory_space<vmem>>, vector<16x128xf32>
      %cst_10 = arith.constant dense<0.000000e+00> : vector<16xf32>
      %11 = vector.multi_reduction <add>, %10, %cst_10 [1] : vector<16x128xf32> to vector<16xf32>
      %12 = vector.shape_cast %11 : vector<16xf32> to vector<16x1xf32>
      %13 = arith.mulf %10, %10 : vector<16x128xf32>
      %cst_11 = arith.constant dense<0.000000e+00> : vector<16xf32>
      %14 = vector.multi_reduction <add>, %13, %cst_11 [1] : vector<16x128xf32> to vector<16xf32>
      %15 = vector.shape_cast %14 : vector<16xf32> to vector<16x1xf32>
      %cst_12 = arith.constant 3.125000e-02 : f32
      %16 = vector.broadcast %cst_12 : f32 to vector<16x1xf32>
      %17 = arith.mulf %12, %16 : vector<16x1xf32>
      %cst_13 = arith.constant 3.125000e-02 : f32
      %18 = vector.broadcast %cst_13 : f32 to vector<16x1xf32>
      %19 = arith.mulf %15, %18 : vector<16x1xf32>
      %20 = arith.mulf %17, %17 : vector<16x1xf32>
      %21 = arith.subf %19, %20 : vector<16x1xf32>
      %cst_14 = arith.constant 0.000000e+00 : f32
      %22 = vector.broadcast %cst_14 : f32 to vector<16x1xf32>
      %23 = arith.maximumf %21, %22 : vector<16x1xf32>
      %cst_15 = arith.constant 9.99999974E-6 : f32
      %24 = vector.broadcast %cst_15 : f32 to vector<16x1xf32>
      %25 = arith.addf %23, %24 : vector<16x1xf32>
      %26 = math.rsqrt %25 : vector<16x1xf32>
      %27 = vector.broadcast %17 : vector<16x1xf32> to vector<16x128xf32>
      %28 = arith.subf %10, %27 : vector<16x128xf32>
      %29 = vector.broadcast %26 : vector<16x1xf32> to vector<16x128xf32>
      %30 = arith.mulf %28, %29 : vector<16x128xf32>
      %c0_16 = arith.constant 0 : index
      %c0_17 = arith.constant 0 : index
      %31 = vector.load %arg6[%c0_16, %c0_17] : memref<16x128xf32, #tpu.memory_space<vmem>>, vector<16x128xf32>
      tpu.vector_store %arg6[%c0_16, %c0_17], %30 {strides = array<i32>} : memref<16x128xf32, #tpu.memory_space<vmem>>, vector<16x128xf32>,
    } else {
    }
    %c0 = arith.constant 0 : index
    %c0_1 = arith.constant 0 : index
    %3 = vector.load %arg6[%c0, %c0_1] : memref<16x128xf32, #tpu.memory_space<vmem>>, vector<16x128xf32>
    %c0_2 = arith.constant 0 : index
    %c0_3 = arith.constant 0 : index
    %4 = vector.load %arg3[%c0_2, %c0_3] : memref<128x128xf32, #tpu.memory_space<vmem>>, vector<128x128xf32>
    %cst = arith.constant dense<0.000000e+00> : vector<16x128xf32>
    %5 = tpu.matmul %3, %4, %cst {dimension_numbers = #tpu.dot_dimension_numbers<[1], [0], [0], [1], [0, 0, 1, 1], [], []>} : vector<16x128xf32>, vector<128x128xf32>, vector<16x128xf32> -> vector<16x128xf32>
    %c0_4 = arith.constant 0 : index
    %c0_5 = arith.constant 0 : index
    %6 = vector.load %arg4[%c0_4, %c0_5] : memref<1x128xf32, #tpu.memory_space<vmem>>, vector<1x128xf32>
    %7 = vector.broadcast %6 : vector<1x128xf32> to vector<16x128xf32>
    %8 = arith.addf %5, %7 : vector<16x128xf32>
    %c0_6 = arith.constant 0 : index
    %c0_7 = arith.constant 0 : index
    %9 = vector.load %arg5[%c0_6, %c0_7] : memref<16x128xf32, #tpu.memory_space<vmem>>, vector<16x128xf32>
    tpu.vector_store %arg5[%c0_6, %c0_7], %8 {strides = array<i32>} : memref<16x128xf32, #tpu.memory_space<vmem>>, vector<16x128xf32>,
    return
  }
  func.func @transform_0(%arg0: i32, %arg1: i32) -> (i32, i32) {
    %c0_i32 = arith.constant 0 : i32
    %c0_i32_0 = arith.constant 0 : i32
    return %arg0, %c0_i32 : i32, i32
  }
  func.func @transform_1(%arg0: i32, %arg1: i32) -> (i32, i32) {
    %c0_i32 = arith.constant 0 : i32
    %c0_i32_0 = arith.constant 0 : i32
    return %c0_i32, %arg1 : i32, i32
  }
  func.func @transform_2(%arg0: i32, %arg1: i32) -> (i32, i32) {
    %c0_i32 = arith.constant 0 : i32
    %c0_i32_0 = arith.constant 0 : i32
    return %c0_i32, %arg1 : i32, i32
  }
  func.func @transform_3(%arg0: i32, %arg1: i32) -> (i32, i32) {
    %c0_i32 = arith.constant 0 : i32
    return %arg0, %arg1 : i32, i32
  }
}

</mosaic_0001>

<llo_original>
// kernel: tpu_custom_call.1
$region0: #{tpu_custom_call.1}
  #allocation0 [shape = 'u32[]', space=smem, size = 0x4, offset = 0x4, fixed_abs, tag = 'smem constant byte address 0x4 - core index']
  #allocation1 [shape = 'u32[144,128]{1,0:T(1,128)}', space=vmem, size = 0x12000, scoped, tag = 'internal scratch']
  #allocation2 [shape = 'f32[16,128]{1,0:T(8,128)}', space=vmem, size = 0x2000, scoped, tag = 'scratch operand']
  %s0 = inlined_call_operand.hbm [shape: f32[16,128], index: 0, kind: input, shape index: {}]
  %s1 = inlined_call_operand.hbm [shape: f32[128,128], index: 1, kind: input, shape index: {}]
  %s2 = inlined_call_operand.vmem [shape: f32[1,128], index: 2, kind: input, shape index: {}]
  %s3 = inlined_call_operand.hbm [shape: f32[16,32], index: 3, kind: output, shape index: {}]
  %s4 = sld [smem:[#allocation0]]
  $region34: #{tpu_custom_call.1} parent=0
    _
  %s6 = ssub.s32 1, %s4
  %s7 = scalar_select 0, %s6, %s4
  $region1: #{tpu_custom_call.1} parent=0
    #allocation3 [shape = 'u8[8192]{0}', space=vmem, size = 0x2000, scoped, tag = 'input window, operand 0, single buffered']
    #allocation4 [shape = 's32[1]{0}', space=sflag, size = 0x4, scoped, tag = 'scoped memory for tpu_custom_call.1']
    #allocation5 [shape = 's32[1]{0}', space=sflag, size = 0x4, scoped, tag = 'scoped memory for tpu_custom_call.1']
    #allocation6 [shape = 'u8[65536]{0}', space=vmem, size = 0x10000, scoped, tag = 'input window, operand 1, single buffered']
    #allocation7 [shape = 's32[1]{0}', space=sflag, size = 0x4, scoped, tag = 'scoped memory for tpu_custom_call.1']
    #allocation8 [shape = 'u8[8192]{0}', space=vmem, size = 0x2000, scoped, tag = 'output window, operand 0, single buffered']
    %8 = vsyncpa [#allocation4], 0
    %9 = vsyncpa [#allocation7], 0
    %10 = vsyncpa [#allocation5], 0
    // Predicated region
    $region2: #{tpu_custom_call.1} parent=1 // pred_check
      _
    $region3: #{tpu_custom_call.1} parent=1 // pred_check_branch
      %12 = sbr.rel (0) target = $region5
    $region4: #{tpu_custom_call.1} parent=1 // pred_region
      %s14 = ssub.s32 256, 256
      %15 = vsyncadd [#allocation4], %s14
      %s16 = sshll.u32 [#allocation3], 4
      %s17 = int_to_ptr.vmem [resolvable:$true] %s16
      %22 = dma.hbm_to_vmem [thread:$0]  %s0, 256, %s17, [#allocation4], 128, 128, 8
    $region5: #{tpu_custom_call.1} parent=1 // pred_fallthru
      _
    // Predicated region
    $region6: #{tpu_custom_call.1} parent=1 // pred_check
      _
    $region7: #{tpu_custom_call.1} parent=1 // pred_check_branch
      %24 = sbr.rel (0) target = $region9
    $region8: #{tpu_custom_call.1} parent=1 // pred_region
      %s26 = ssub.s32 2048, 2048
      %27 = vsyncadd [#allocation7], %s26
      %s28 = sshll.u32 [#allocation6], 4
      %s29 = int_to_ptr.vmem [resolvable:$true] %s28
      %34 = dma.hbm_to_vmem [thread:$0]  %s1, 2048, %s29, [#allocation7], 128, 128, 8
    $region9: #{tpu_custom_call.1} parent=1 // pred_fallthru
      _
    // Predicated region
    $region10: #{tpu_custom_call.1} parent=1 // pred_check
      _
    $region11: #{tpu_custom_call.1} parent=1 // pred_check_branch
      %36 = sbr.rel (0) target = $region13
    $region12: #{tpu_custom_call.1} parent=1 // pred_region
      _
    $region13: #{tpu_custom_call.1} parent=1 // pred_fallthru
      _
    // Predicated region
    $region14: #{tpu_custom_call.1} parent=1 // pred_check
      _
    $region15: #{tpu_custom_call.1} parent=1 // pred_check_branch
      %38 = sbr.rel (0) target = $region17
    $region16: #{tpu_custom_call.1} parent=1 // pred_region
      %39 = dma.done [#allocation4], 256
    $region17: #{tpu_custom_call.1} parent=1 // pred_fallthru
      _
    // Predicated region
    $region18: #{tpu_custom_call.1} parent=1 // pred_check
      _
    $region19: #{tpu_custom_call.1} parent=1 // pred_check_branch
      %41 = sbr.rel (0) target = $region21
    $region20: #{tpu_custom_call.1} parent=1 // pred_region
      %42 = dma.done [#allocation7], 2048
    $region21: #{tpu_custom_call.1} parent=1 // pred_fallthru
      _
    %p43 = scmp.eq.s32.totalorder 0, 0
    // Predicated region
    $region22: #{tpu_custom_call.1} parent=1 // pred_check
      %p44 = pneg %p43
    $region23: #{tpu_custom_call.1} parent=1 // pred_check_branch
      %46 = sbr.rel (%p44) target = $region25
    $region24: #{tpu_custom_call.1} parent=1 // pred_region
      %v47 = vld [vmem:[#allocation3] sm:$0xff]
      %v48 = vld [vmem:[#allocation3 + $0x8] sm:$0xff]
      %49 = vadd.xlane.f32.xlu0 %v47
      %v50 = vpop.xlane.xlu0 %49
      %51 = vadd.xlane.f32.xlu0 %v48
      %v52 = vpop.xlane.xlu0 %51
      %v53 = vmul.f32 %v47, %v47
      %v54 = vmul.f32 %v48, %v48
      %55 = vadd.xlane.f32.xlu0 %v53
      %v56 = vpop.xlane.xlu0 %55
      %57 = vadd.xlane.f32.xlu0 %v54
      %v58 = vpop.xlane.xlu0 %57
      %v59 = vmul.f32 %v50, 0.03125
      %v60 = vmul.f32 %v52, 0.03125
      %v61 = vmul.f32 %v56, 0.03125
      %v62 = vmul.f32 %v58, 0.03125
      %v63 = vmul.f32 %v59, %v59
      %v64 = vmul.f32 %v60, %v60
      %v65 = vsub.f32 %v61, %v63
      %v66 = vsub.f32 %v62, %v64
      %v67 = vmax.f32 %v65, 0.0
      %v68 = vmax.f32 %v66, 0.0
      %v69 = vadd.f32 %v67, 1e-05
      %v70 = vadd.f32 %v68, 1e-05
      %v71 = vrsqrt.pop %v69
      %v72 = vrsqrt.pop %v70
      %v73 = vsub.f32 %v47, %v59
      %v74 = vsub.f32 %v48, %v60
      %v75 = vmul.f32 %v73, %v71
      %v76 = vmul.f32 %v74, %v72
      %77 = vst [vmem:[#allocation2] sm:$0xff] %v75
      %78 = vst [vmem:[#allocation2 + $0x8] sm:$0xff] %v76
    $region25: #{tpu_custom_call.1} parent=1 // pred_fallthru
      _
    %v79 = vld [vmem:[#allocation2] sm:$0xff]
    %v80 = vld [vmem:[#allocation2 + $0x8] sm:$0xff]
    %v81 = vld [vmem:[#allocation6] sm:$0xff]
    %v82 = vld [vmem:[#allocation6 + $0x8] sm:$0xff]
    %v83 = vld [vmem:[#allocation6 + $0x10] sm:$0xff]
    %v84 = vld [vmem:[#allocation6 + $0x18] sm:$0xff]
    %v85 = vld [vmem:[#allocation6 + $0x20] sm:$0xff]
    %v86 = vld [vmem:[#allocation6 + $0x28] sm:$0xff]
    %v87 = vld [vmem:[#allocation6 + $0x30] sm:$0xff]
    %v88 = vld [vmem:[#allocation6 + $0x38] sm:$0xff]
    %v89 = vld [vmem:[#allocation6 + $0x40] sm:$0xff]
    %v90 = vld [vmem:[#allocation6 + $0x48] sm:$0xff]
    %v91 = vld [vmem:[#allocation6 + $0x50] sm:$0xff]
    %v92 = vld [vmem:[#allocation6 + $0x58] sm:$0xff]
    %v93 = vld [vmem:[#allocation6 + $0x60] sm:$0xff]
    %v94 = vld [vmem:[#allocation6 + $0x68] sm:$0xff]
    %v95 = vld [vmem:[#allocation6 + $0x70] sm:$0xff]
    %v96 = vld [vmem:[#allocation6 + $0x78] sm:$0xff]
    %v97 = vld [vmem:[%s2] sm:$0x1]
    %v99 = vlaneseq
    %v100 = vshrl.u32 %v99, 7
    %v101 = vsub.s32 0, %v100
    %v102 = vrot.slane %v97, %v101
    %104 = vmatprep.subr.mxu0 0.0
    %105 = vmatpush1.msra.mxu0 %v81
    %106 = vmatprep.subr.mxu0 0.0
    %107 = vmatpush1.msra.mxu0 %v82
    %108 = vmatprep.subr.mxu0 0.0
    %109 = vmatpush1.msra.mxu0 %v83
    %110 = vmatprep.subr.mxu0 0.0
    %111 = vmatpush1.msra.mxu0 %v84
    %112 = vmatprep.subr.mxu0 0.0
    %113 = vmatpush1.msra.mxu0 %v85
    %114 = vmatprep.subr.mxu0 0.0
    %115 = vmatpush1.msra.mxu0 %v86
    %116 = vmatprep.subr.mxu0 0.0
    %117 = vmatpush1.msra.mxu0 %v87
    %118 = vmatprep.subr.mxu0 0.0
    %119 = vmatpush1.msra.mxu0 %v88
    %120 = vmatprep.subr.mxu0 0.0
    %121 = vmatpush1.msra.mxu0 %v89
    %122 = vmatprep.subr.mxu0 0.0
    %123 = vmatpush1.msra.mxu0 %v90
    %124 = vmatprep.subr.mxu0 0.0
    %125 = vmatpush1.msra.mxu0 %v91
    %126 = vmatprep.subr.mxu0 0.0
    %127 = vmatpush1.msra.mxu0 %v92
    %128 = vmatprep.subr.mxu0 0.0
    %129 = vmatpush1.msra.mxu0 %v93
    %130 = vmatprep.subr.mxu0 0.0
    %131 = vmatpush1.msra.mxu0 %v94
    %132 = vmatprep.subr.mxu0 0.0
    %133 = vmatpush1.msra.mxu0 %v95
    %134 = vmatprep.subr.mxu0 0.0
    %135 = vmatpush1.msra.mxu0 %v96
    %136 = vmatprep.subr.mxu0 0.0
    %137 = vmatpush1.msra.mxu0 0.0
    %138 = vmatprep.subr.mxu0 0.0
    %139 = vmatpush1.msra.mxu0 0.0
    %140 = vmatprep.subr.mxu0 0.0
    %141 = vmatpush1.msra.mxu0 0.0
    %142 = vmatprep.subr.mxu0 0.0
    %143 = vmatpush1.msra.mxu0 0.0
    %144 = vmatprep.subr.mxu0 0.0
    %145 = vmatpush1.msra.mxu0 0.0
    %146 = vmatprep.subr.mxu0 0.0
    %147 = vmatpush1.msra.mxu0 0.0
    %148 = vmatprep.subr.mxu0 0.0
    %149 = vmatpush1.msra.mxu0 0.0
    %150 = vmatprep.subr.mxu0 0.0
    %151 = vmatpush1.msra.mxu0 0.0
    %152 = vmatprep.subr.mxu0 0.0
    %153 = vmatpush1.msra.mxu0 0.0
    %154 = vmatprep.subr.mxu0 0.0
    %155 = vmatpush1.msra.mxu0 0.0
    %156 = vmatprep.subr.mxu0 0.0
    %157 = vmatpush1.msra.mxu0 0.0
    %158 = vmatprep.subr.mxu0 0.0
    %159 = vmatpush1.msra.mxu0 0.0
    %160 = vmatprep.subr.mxu0 0.0
    %161 = vmatpush1.msra.mxu0 0.0
    %162 = vmatprep.subr.mxu0 0.0
    %163 = vmatpush1.msra.mxu0 0.0
    %164 = vmatprep.subr.mxu0 0.0
    %165 = vmatpush1.msra.mxu0 0.0
    %166 = vmatprep.subr.mxu0 0.0
    %167 = vmatpush1.msra.mxu0 0.0
    %168 = vmatprep.mubr.f32.mxu0 0.0
    %169 = vmatmul.mubr.f32.gmra.mrb[0].mxu0 %v79
    %v170 = vpop.f32.mrb[0].mxu0
    %v171 = vadd.f32 %v102, %v170
    %v172 = vpop.f32.mrb[0].mxu0
    %173 = vmatprep.mubr.f32.mxu0 0.0
    %174 = vmatmul.mubr.f32.gmra.mrb[0].mxu0 %v80
    %v175 = vpop.f32.mrb[0].mxu0
    %v176 = vadd.f32 %v102, %v175
    %v177 = vpop.f32.mrb[0].mxu0
    %178 = vdwg.mxu0
    %179 = vst [vmem:[#allocation8] sm:$0xff] %v171
    %180 = vst [vmem:[#allocation8 + $0x8] sm:$0xff] %v176
    // Predicated region
    $region26: #{tpu_custom_call.1} parent=1 // pred_check
      _
    $region27: #{tpu_custom_call.1} parent=1 // pred_check_branch
      %182 = sbr.rel (0) target = $region29
    $region28: #{tpu_custom_call.1} parent=1 // pred_region
      %s184 = ssub.s32 256, 256
      %185 = vsyncadd [#allocation5], %s184
      %s186 = sshll.u32 [#allocation8], 4
      %s187 = int_to_ptr.vmem [resolvable:$true] %s186
      %192 = dma.vmem_to_hbm [thread:$0]  %s187, 256, %s3, [#allocation5], 128, 128, 8
    $region29: #{tpu_custom_call.1} parent=1 // pred_fallthru
      _
    // Predicated region
    $region30: #{tpu_custom_call.1} parent=1 // pred_check
      _
    $region31: #{tpu_custom_call.1} parent=1 // pred_check_branch
      %194 = sbr.rel (0) target = $region33
    $region32: #{tpu_custom_call.1} parent=1 // pred_region
      %195 = dma.done [#allocation5], 256
    $region33: #{tpu_custom_call.1} parent=1 // pred_fallthru
      _
    %196 = vsyncpa [#allocation4], 1
    %197 = vsyncpa [#allocation7], 1
    %198 = vsyncpa [#allocation5], 1

</llo_original>
